<compile_context>
chip_gen: v5e
topology: v5e:2x2
jax: 0.10.0
libtpu: 0.0.40
codegen_flags: <defaults>
</compile_context>

<pallas_src>
import functools

import jax
import jax.numpy as jnp
from jax.experimental import pallas as pl
from jax.experimental.pallas import tpu as pltpu


def _avg_pool_kernel(x_ref, o_ref):
    # x_ref: (K, BM, L) window-stacked block; o_ref: (BM, L) with L = Ho*Wo (lane-dense).
    k = x_ref.shape[0]
    acc = x_ref[0].astype(jnp.float32)            # accumulate in f32
    for r in range(1, k):                         # K = s*s is tiny; unrolled VPU adds
        acc = acc + x_ref[r].astype(jnp.float32)
    o_ref[...] = (acc * (1.0 / k)).astype(o_ref.dtype)


def _pick_block_rows(nc, k, l, itemsize):
    """Images per grid step: multi-MiB input blocks, dtype-aligned sublanes, grid >= 2."""
    align = 8 * max(1, 4 // itemsize)             # sublane packing: f32->8, bf16->16, i8->32
    target_bytes = 4 << 20                        # ~4 MiB input block per step
    bm = max(1, target_bytes // (k * l * itemsize))
    bm = max(align, (bm // align) * align)
    if nc >= 4 * align:
        # keep at least 2 grid steps so both v7x TensorCores get a shard
        bm = min(bm, max(align, (nc // 2 // align) * align))
    if bm >= nc or nc < align:
        bm = nc                                   # full-dim block is always legal
    return bm


@functools.partial(jax.jit, static_argnames=("stride",))
def avg_pool2d(x, stride=2):
    """Equivalent of torch.nn.AvgPool2d(stride, stride=stride) on NCHW input."""
    s = int(stride)
    N, C, H, W = x.shape
    Ho, Wo = H // s, W // s
    # PyTorch AvgPool2d drops trailing rows/cols that don't fill a full window.
    x = x[:, :, : Ho * s, : Wo * s]

    NC, L, K = N * C, Ho * Wo, s * s

    # Window-stack + flatten spatial dims -> (K, NC, Ho*Wo) lane-dense slab.
    # allow_input_fusion below asks XLA to fuse this rearrange into the kernel's
    # input DMA rather than materializing an extra HBM pass.
    xr = x.reshape(NC, Ho, s, Wo, s)
    xr = jnp.transpose(xr, (2, 4, 0, 1, 3)).reshape(K, NC, L)

    bm = _pick_block_rows(NC, K, L, jnp.dtype(x.dtype).itemsize)
    grid = (pl.cdiv(NC, bm),)

    out = pl.pallas_call(
        _avg_pool_kernel,
        out_shape=jax.ShapeDtypeStruct((NC, L), x.dtype),
        grid=grid,
        in_specs=[pl.BlockSpec((K, bm, L), lambda i: (0, i, 0))],
        out_specs=pl.BlockSpec((bm, L), lambda i: (i, 0)),
        compiler_params=pltpu.CompilerParams(
            dimension_semantics=("parallel",),
            vmem_limit_bytes=32 << 20,
            allow_input_fusion=[True],
        ),
    )(xr)
    return out.reshape(N, C, Ho, Wo)


if __name__ == "__main__":
    key = jax.random.PRNGKey(0)

    # Primary check: shapes implied by the module (batch=2, channels=4, 16x16), f32.
    N, C, H, W = 2, 4, 16, 16
    x = jax.random.normal(key, (N, C, H, W), dtype=jnp.float32)
    y = jax.block_until_ready(avg_pool2d(x, stride=2))
    ref = x.reshape(N, C, H // 2, 2, W // 2, 2).mean(axis=(3, 5))
    assert y.shape == (N, C, H // 2, W // 2), y.shape
    assert jnp.allclose(y, ref, atol=1e-5, rtol=1e-5)

    # bf16 input (exercises f32 accumulation path).
    k2 = jax.random.PRNGKey(1)
    N2, C2, H2, W2 = 3, 8, 32, 32
    xb = jax.random.normal(k2, (N2, C2, H2, W2), dtype=jnp.bfloat16)
    yb = jax.block_until_ready(avg_pool2d(xb, stride=2))
    refb = xb.astype(jnp.float32).reshape(N2, C2, H2 // 2, 2, W2 // 2, 2).mean(axis=(3, 5))
    assert yb.shape == (N2, C2, H2 // 2, W2 // 2), yb.shape
    assert jnp.allclose(yb.astype(jnp.float32), refb, atol=2e-2, rtol=2e-2)

    # Odd spatial dims (PyTorch crops the trailing row/col).
    k3 = jax.random.PRNGKey(2)
    N3, C3, H3, W3 = 2, 3, 13, 11
    xc = jax.random.normal(k3, (N3, C3, H3, W3), dtype=jnp.float32)
    yc = jax.block_until_ready(avg_pool2d(xc, stride=2))
    refc = xc[:, :, :12, :10].reshape(N3, C3, 6, 2, 5, 2).mean(axis=(3, 5))
    assert yc.shape == (N3, C3, 6, 5), yc.shape
    assert jnp.allclose(yc, refc, atol=1e-5, rtol=1e-5)

    print("KERNEL_OK")
</pallas_src>

<mosaic_0001>
module attributes {stable_mosaic.version = 11 : i64} {
  func.func @_avg_pool_kernel(%arg0: i32, %arg1: memref<4x8x64xf32, #tpu.memory_space<vmem>>, %arg2: memref<8x64xf32, #tpu.memory_space<vmem>>) attributes {dimension_semantics = [#tpu.dimension_semantics<parallel>], iteration_bounds = array<i64: 1>, scalar_prefetch = 0 : i64, scratch_operands = 0 : i64, tpu.core_type = #tpu.core_type<tc>, window_params = [{transform_indices = @transform_0, window_bounds = array<i64: 4, 8, 64>}, {transform_indices = @transform_1, window_bounds = array<i64: 8, 64>}]} {
    %c0 = arith.constant 0 : index
    %c0_0 = arith.constant 0 : index
    %c0_1 = arith.constant 0 : index
    %0 = vector.load %arg1[%c0, %c0_0, %c0_1] : memref<4x8x64xf32, #tpu.memory_space<vmem>>, vector<1x8x64xf32>
    %1 = vector.shape_cast %0 : vector<1x8x64xf32> to vector<8x64xf32>
    %c1 = arith.constant 1 : index
    %c0_2 = arith.constant 0 : index
    %c0_3 = arith.constant 0 : index
    %2 = vector.load %arg1[%c1, %c0_2, %c0_3] : memref<4x8x64xf32, #tpu.memory_space<vmem>>, vector<1x8x64xf32>
    %3 = vector.shape_cast %2 : vector<1x8x64xf32> to vector<8x64xf32>
    %4 = arith.addf %1, %3 : vector<8x64xf32>
    %c2 = arith.constant 2 : index
    %c0_4 = arith.constant 0 : index
    %c0_5 = arith.constant 0 : index
    %5 = vector.load %arg1[%c2, %c0_4, %c0_5] : memref<4x8x64xf32, #tpu.memory_space<vmem>>, vector<1x8x64xf32>
    %6 = vector.shape_cast %5 : vector<1x8x64xf32> to vector<8x64xf32>
    %7 = arith.addf %4, %6 : vector<8x64xf32>
    %c3 = arith.constant 3 : index
    %c0_6 = arith.constant 0 : index
    %c0_7 = arith.constant 0 : index
    %8 = vector.load %arg1[%c3, %c0_6, %c0_7] : memref<4x8x64xf32, #tpu.memory_space<vmem>>, vector<1x8x64xf32>
    %9 = vector.shape_cast %8 : vector<1x8x64xf32> to vector<8x64xf32>
    %10 = arith.addf %7, %9 : vector<8x64xf32>
    %cst = arith.constant 2.500000e-01 : f32
    %11 = vector.broadcast %cst : f32 to vector<8x64xf32>
    %12 = arith.mulf %10, %11 : vector<8x64xf32>
    %c0_8 = arith.constant 0 : index
    %c0_9 = arith.constant 0 : index
    %13 = vector.load %arg2[%c0_8, %c0_9] : memref<8x64xf32, #tpu.memory_space<vmem>>, vector<8x64xf32>
    tpu.vector_store %arg2[%c0_8, %c0_9], %12 {strides = array<i32>} : memref<8x64xf32, #tpu.memory_space<vmem>>, vector<8x64xf32>,
    return
  }
  func.func @transform_0(%arg0: i32) -> (i32, i32, i32) {
    %c0_i32 = arith.constant 0 : i32
    %c0_i32_0 = arith.constant 0 : i32
    %c0_i32_1 = arith.constant 0 : i32
    return %c0_i32, %arg0, %c0_i32_0 : i32, i32, i32
  }
  func.func @transform_1(%arg0: i32) -> (i32, i32) {
    %c0_i32 = arith.constant 0 : i32
    %c0_i32_0 = arith.constant 0 : i32
    return %arg0, %c0_i32 : i32, i32
  }
}

</mosaic_0001>

<llo_original>
// kernel: avg_pool2d.1
$region0: #{avg_pool2d.1}
  #allocation0 [shape = 'u32[]', space=smem, size = 0x4, offset = 0x4, fixed_abs, tag = 'smem constant byte address 0x4 - core index']
  #allocation1 [shape = 'u32[72,128]{1,0:T(1,128)}', space=vmem, size = 0x9000, scoped, tag = 'internal scratch']
  %s0 = inlined_call_operand.vmem [shape: f32[4,8,64], index: 0, kind: input, shape index: {}]
  %s1 = inlined_call_operand.vmem [shape: f32[8,64], index: 1, kind: output, shape index: {}]
  %s2 = sld [smem:[#allocation0]]
  $region14: #{avg_pool2d.1} parent=0
    _
  %s4 = ssub.s32 1, %s2
  %s5 = scalar_select 0, %s4, %s2
  // Predicated region
  $region2: #{avg_pool2d.1} parent=0 // pred_check
    _
  $region3: #{avg_pool2d.1} parent=0 // pred_check_branch
    %7 = sbr.rel (0) target = $region5
  $region4: #{avg_pool2d.1} parent=0 // pred_region
    _
  $region5: #{avg_pool2d.1} parent=0 // pred_fallthru
    _
  %v8 = vld [vmem:[%s0] sm:$0xff]
  %s9 = scalar_lea.vmem %s0, 8
  %v10 = vld [vmem:[%s9] sm:$0xff]
  %v11 = vadd.f32 %v8, %v10
  %s12 = scalar_lea.vmem %s0, 16
  %v13 = vld [vmem:[%s12] sm:$0xff]
  %v14 = vadd.f32 %v11, %v13
  %s15 = scalar_lea.vmem %s0, 24
  %v16 = vld [vmem:[%s15] sm:$0xff]
  %v17 = vadd.f32 %v14, %v16
  %v18 = vmul.f32 %v17, 0.25
  %vm19 = vcmask 523264
  %20 = vst.msk [vmem:[%s1] sm:$0xff] %vm19, %v18
  // Predicated region
  $region6: #{avg_pool2d.1} parent=0 // pred_check
    _
  $region7: #{avg_pool2d.1} parent=0 // pred_check_branch
    %22 = sbr.rel (0) target = $region9
  $region8: #{avg_pool2d.1} parent=0 // pred_region
    _
  $region9: #{avg_pool2d.1} parent=0 // pred_fallthru
    _
  // Predicated region
  $region10: #{avg_pool2d.1} parent=0 // pred_check
    _
  $region11: #{avg_pool2d.1} parent=0 // pred_check_branch
    %24 = sbr.rel (0) target = $region13
  $region12: #{avg_pool2d.1} parent=0 // pred_region
    _
  $region13: #{avg_pool2d.1} parent=0 // pred_fallthru
    _

</llo_original>
